<compile_context>
chip_gen: v5e
topology: v5e:2x2
jax: 0.10.0
libtpu: 0.0.40
codegen_flags: <defaults>
</compile_context>

<pallas_src>
import math

import jax
import jax.numpy as jnp
from jax.experimental import pallas as pl
from jax.experimental.pallas import tpu as pltpu


_LANE = 128
_SUBLANE = 8
_TARGET_TILE_BYTES = 2 << 20  # ~2 MiB/tile; 2 arrays x 2 buffers => ~8 MiB VMEM


def _identity_kernel(img_ref, msk_ref, img_out_ref, msk_out_ref):
    # Fused elementwise pass-through of both tiles. No MXU/EUP/XLU work —
    # purely vld/vst feeding the pipeline DMAs (HBM-bandwidth bound).
    img_out_ref[...] = img_ref[...]
    msk_out_ref[...] = msk_ref[...]


def _as_2d(x: jax.Array) -> jax.Array:
    """Zero-copy reshape to a lane-dense 2D view (no padding, native order)."""
    n = x.size
    if n % _LANE == 0:
        cols = _LANE
        for c in (4096, 2048, 1024, 512, 256):  # widen lanes when it divides
            if n % c == 0:
                cols = c
                break
        return x.reshape(n // cols, cols)
    if x.ndim >= 2:
        # Collapse leading dims; the last-dim block equals the full dim, so the
        # (8,128) divisibility rule is waived.
        return x.reshape(-1, x.shape[-1])
    return x.reshape(1, n)


def _divisors(n: int):
    out = set()
    i = 1
    while i * i <= n:
        if n % i == 0:
            out.add(i)
            out.add(n // i)
        i += 1
    return sorted(out)


def _pick_grid(rows_a: int, row_bytes_a: int, rows_b: int, row_bytes_b: int) -> int:
    """Smallest shared row-tile count G (G | rows_a and G | rows_b) whose tiles
    fit the ~2 MiB target.  Tile row counts stay multiples of 8 (or full dim),
    keeping the (8,128) tiling rule satisfied without any padding."""
    g = math.gcd(max(rows_a, 1), max(rows_b, 1))
    best = 1
    for cand in _divisors(g):
        if cand > 1 and ((rows_a // cand) % _SUBLANE or (rows_b // cand) % _SUBLANE):
            continue
        best = cand
        if ((rows_a // cand) * row_bytes_a <= _TARGET_TILE_BYTES
                and (rows_b // cand) * row_bytes_b <= _TARGET_TILE_BYTES):
            break  # smallest G meeting the target => largest tiles <= ~2 MiB
    return best


def _fused_identity_copy(image: jax.Array, mask: jax.Array):
    img2d = _as_2d(image)
    msk2d = _as_2d(mask)
    (ri, ci), (rm, cm) = img2d.shape, msk2d.shape

    grid_n = _pick_grid(ri, ci * img2d.dtype.itemsize,
                        rm, cm * msk2d.dtype.itemsize)
    tri, trm = ri // grid_n, rm // grid_n

    img_out, msk_out = pl.pallas_call(
        _identity_kernel,
        out_shape=(jax.ShapeDtypeStruct((ri, ci), img2d.dtype),
                   jax.ShapeDtypeStruct((rm, cm), msk2d.dtype)),
        grid_spec=pltpu.PrefetchScalarGridSpec(
            num_scalar_prefetch=0,
            grid=(grid_n,),
            in_specs=[pl.BlockSpec((tri, ci), lambda i: (i, 0)),
                      pl.BlockSpec((trm, cm), lambda i: (i, 0))],
            out_specs=[pl.BlockSpec((tri, ci), lambda i: (i, 0)),
                       pl.BlockSpec((trm, cm), lambda i: (i, 0))],
        ),
        compiler_params=pltpu.CompilerParams(
            dimension_semantics=("parallel",),  # shards rows across v7x's 2 TCs
        ),
    )(img2d, msk2d)

    # Pure metadata reshapes back to the callers' shapes; no dtype cast needed.
    return img_out.reshape(image.shape), msk_out.reshape(mask.shape)


_identity_jit = jax.jit(_fused_identity_copy)


def identity_forward(image: jax.Array, mask: jax.Array, *args, **kwargs):
    """Pallas equivalent of Identity.forward(image, mask) -> (image, mask)."""
    if image.size == 0 or mask.size == 0:
        return image, mask  # degenerate: nothing to copy
    return _identity_jit(image, mask)


if __name__ == "__main__":
    key = jax.random.PRNGKey(0)
    k1, k2 = jax.random.split(key)
    # Small NCHW shapes consistent with the module: image (2,4,16,16), mask (2,1,16,16)
    image = jax.random.normal(k1, (2, 4, 16, 16), dtype=jnp.float32)
    mask = (jax.random.uniform(k2, (2, 1, 16, 16)) > 0.5).astype(jnp.float32)

    out_image, out_mask = identity_forward(image, mask)
    jax.block_until_ready(out_image)
    jax.block_until_ready(out_mask)

    assert out_image.shape == image.shape and out_image.dtype == image.dtype
    assert out_mask.shape == mask.shape and out_mask.dtype == mask.dtype
    assert bool(jnp.all(out_image == image))
    assert bool(jnp.all(out_mask == mask))

    print("KERNEL_OK")
</pallas_src>

<mosaic_0001>
module attributes {stable_mosaic.version = 11 : i64} {
  func.func @_identity_kernel(%arg0: i32, %arg1: memref<1x2048xf32, #tpu.memory_space<vmem>>, %arg2: memref<1x512xf32, #tpu.memory_space<vmem>>, %arg3: memref<1x2048xf32, #tpu.memory_space<vmem>>, %arg4: memref<1x512xf32, #tpu.memory_space<vmem>>) attributes {dimension_semantics = [#tpu.dimension_semantics<parallel>], iteration_bounds = array<i64: 1>, scalar_prefetch = 0 : i64, scratch_operands = 0 : i64, tpu.core_type = #tpu.core_type<tc>, window_params = [{transform_indices = @transform_0, window_bounds = array<i64: 1, 2048>}, {transform_indices = @transform_1, window_bounds = array<i64: 1, 512>}, {transform_indices = @transform_2, window_bounds = array<i64: 1, 2048>}, {transform_indices = @transform_3, window_bounds = array<i64: 1, 512>}]} {
    %c0 = arith.constant 0 : index
    %c0_0 = arith.constant 0 : index
    %0 = vector.load %arg1[%c0, %c0_0] : memref<1x2048xf32, #tpu.memory_space<vmem>>, vector<1x2048xf32>
    %c0_1 = arith.constant 0 : index
    %c0_2 = arith.constant 0 : index
    %1 = vector.load %arg3[%c0_1, %c0_2] : memref<1x2048xf32, #tpu.memory_space<vmem>>, vector<1x2048xf32>
    tpu.vector_store %arg3[%c0_1, %c0_2], %0 {strides = array<i32>} : memref<1x2048xf32, #tpu.memory_space<vmem>>, vector<1x2048xf32>,
    %c0_3 = arith.constant 0 : index
    %c0_4 = arith.constant 0 : index
    %2 = vector.load %arg2[%c0_3, %c0_4] : memref<1x512xf32, #tpu.memory_space<vmem>>, vector<1x512xf32>
    %c0_5 = arith.constant 0 : index
    %c0_6 = arith.constant 0 : index
    %3 = vector.load %arg4[%c0_5, %c0_6] : memref<1x512xf32, #tpu.memory_space<vmem>>, vector<1x512xf32>
    tpu.vector_store %arg4[%c0_5, %c0_6], %2 {strides = array<i32>} : memref<1x512xf32, #tpu.memory_space<vmem>>, vector<1x512xf32>,
    return
  }
  func.func @transform_0(%arg0: i32) -> (i32, i32) {
    %c0_i32 = arith.constant 0 : i32
    %c0_i32_0 = arith.constant 0 : i32
    return %arg0, %c0_i32 : i32, i32
  }
  func.func @transform_1(%arg0: i32) -> (i32, i32) {
    %c0_i32 = arith.constant 0 : i32
    %c0_i32_0 = arith.constant 0 : i32
    return %arg0, %c0_i32 : i32, i32
  }
  func.func @transform_2(%arg0: i32) -> (i32, i32) {
    %c0_i32 = arith.constant 0 : i32
    %c0_i32_0 = arith.constant 0 : i32
    return %arg0, %c0_i32 : i32, i32
  }
  func.func @transform_3(%arg0: i32) -> (i32, i32) {
    %c0_i32 = arith.constant 0 : i32
    %c0_i32_0 = arith.constant 0 : i32
    return %arg0, %c0_i32 : i32, i32
  }
}

</mosaic_0001>

<llo_original>
// kernel: _fused_identity_copy.1
$region0: #{_fused_identity_copy.1}
  #allocation0 [shape = 'u32[]', space=smem, size = 0x4, offset = 0x4, fixed_abs, tag = 'smem constant byte address 0x4 - core index']
  #allocation1 [shape = 'u32[72,128]{1,0:T(1,128)}', space=vmem, size = 0x9000, scoped, tag = 'internal scratch']
  %s0 = inlined_call_operand.vmem [shape: f32[1,2048], index: 0, kind: input, shape index: {}]
  %s1 = inlined_call_operand.vmem [shape: f32[1,512], index: 1, kind: input, shape index: {}]
  %s2 = inlined_call_operand.vmem [shape: f32[1,2048], index: 2, kind: output, shape index: {0}]
  %s3 = inlined_call_operand.vmem [shape: f32[1,512], index: 3, kind: output, shape index: {1}]
  %4 = xla_tuple %s2, %s3
  %s5 = sld [smem:[#allocation0]]
  $region26: #{_fused_identity_copy.1} parent=0
    _
  %s7 = ssub.s32 1, %s5
  %s8 = scalar_select 0, %s7, %s5
  // Predicated region
  $region2: #{_fused_identity_copy.1} parent=0 // pred_check
    _
  $region3: #{_fused_identity_copy.1} parent=0 // pred_check_branch
    %10 = sbr.rel (0) target = $region5
  $region4: #{_fused_identity_copy.1} parent=0 // pred_region
    _
  $region5: #{_fused_identity_copy.1} parent=0 // pred_fallthru
    _
  // Predicated region
  $region6: #{_fused_identity_copy.1} parent=0 // pred_check
    _
  $region7: #{_fused_identity_copy.1} parent=0 // pred_check_branch
    %12 = sbr.rel (0) target = $region9
  $region8: #{_fused_identity_copy.1} parent=0 // pred_region
    _
  $region9: #{_fused_identity_copy.1} parent=0 // pred_fallthru
    _
  %v13 = vld [vmem:[%s0] sm:$0xff]
  %v14 = vld [vmem:[%s0 + $0x8] sm:$0xff]
  %15 = vst [vmem:[%s2] sm:$0xff] %v13
  %16 = vst [vmem:[%s2 + $0x8] sm:$0xff] %v14
  %v17 = vld [vmem:[%s1] sm:$0xf]
  %v18 = vlaneseq
  %vm19 = vcmp.ge.s32.totalorder %v18, 0
  %vm20 = vcmp.lt.s32.totalorder %v18, 512
  %vm21 = vmand %vm19, %vm20
  %22 = vst.msk [vmem:[%s3] sm:$0xf] %vm21, %v17
  // Predicated region
  $region10: #{_fused_identity_copy.1} parent=0 // pred_check
    _
  $region11: #{_fused_identity_copy.1} parent=0 // pred_check_branch
    %24 = sbr.rel (0) target = $region13
  $region12: #{_fused_identity_copy.1} parent=0 // pred_region
    _
  $region13: #{_fused_identity_copy.1} parent=0 // pred_fallthru
    _
  // Predicated region
  $region14: #{_fused_identity_copy.1} parent=0 // pred_check
    _
  $region15: #{_fused_identity_copy.1} parent=0 // pred_check_branch
    %26 = sbr.rel (0) target = $region17
  $region16: #{_fused_identity_copy.1} parent=0 // pred_region
    _
  $region17: #{_fused_identity_copy.1} parent=0 // pred_fallthru
    _
  // Predicated region
  $region18: #{_fused_identity_copy.1} parent=0 // pred_check
    _
  $region19: #{_fused_identity_copy.1} parent=0 // pred_check_branch
    %28 = sbr.rel (0) target = $region21
  $region20: #{_fused_identity_copy.1} parent=0 // pred_region
    _
  $region21: #{_fused_identity_copy.1} parent=0 // pred_fallthru
    _
  // Predicated region
  $region22: #{_fused_identity_copy.1} parent=0 // pred_check
    _
  $region23: #{_fused_identity_copy.1} parent=0 // pred_check_branch
    %30 = sbr.rel (0) target = $region25
  $region24: #{_fused_identity_copy.1} parent=0 // pred_region
    _
  $region25: #{_fused_identity_copy.1} parent=0 // pred_fallthru
    _

</llo_original>
